<compile_context>
chip_gen: v6e
topology: v6e:2x2x1
jax: 0.10.0
libtpu: 0.0.40
codegen_flags: <defaults>
</compile_context>

<pallas_src>
import functools

import jax
import jax.numpy as jnp
import numpy as np
from jax.experimental import pallas as pl
from jax.experimental.pallas import tpu as pltpu


# ----------------------------------------------------------------------------
# Pallas kernel: fused init/row/col embed + both ContextualGating networks
# ----------------------------------------------------------------------------
def _atsp_embed_kernel(x_ref, w0_ref, b0_ref, w1_ref, b1_ref, w2_ref, b2_ref,
                       out_ref, *, D):
    # Stage 1: one block-diagonal matmul -> [coord | row_emb | col_emb] (tm, 3D)
    cre = jnp.dot(x_ref[...], w0_ref[...],
                  preferred_element_type=jnp.float32) + b0_ref[...]

    # Stage 2: one block-structured matmul for BOTH gating hidden layers
    #   columns [0:2D]  = coord @ w1_row[:D] + row_emb @ w1_row[D:]
    #   columns [2D:4D] = coord @ w1_col[:D] + col_emb @ w1_col[D:]
    h = jnp.dot(cre, w1_ref[...],
                preferred_element_type=jnp.float32) + b1_ref[...]
    h = jnp.maximum(h, 0.0)                                   # ReLU

    # Gate scalar via VPU multiply + XLU lane-sum (no 1-lane MXU matmul).
    hw = h * w2_ref[...]                                      # (tm, 4D)
    z_r = jnp.sum(hw[:, : 2 * D], axis=-1, keepdims=True)     # (tm, 1)
    z_c = jnp.sum(hw[:, 2 * D:], axis=-1, keepdims=True)      # (tm, 1)
    b2 = b2_ref[...]                                          # (1, 2)
    g_r = jax.nn.sigmoid(z_r + b2[:, 0:1])
    g_c = jax.nn.sigmoid(z_c + b2[:, 1:2])

    coord = cre[:, :D]
    row_e = cre[:, D: 2 * D]
    col_e = cre[:, 2 * D:]
    out_row = g_r * coord + (1.0 - g_r) * row_e
    out_col = g_c * coord + (1.0 - g_c) * col_e

    # Single lane-dense store; wrapper splits the two halves.
    out_ref[...] = jnp.concatenate([out_row, out_col], axis=-1)


# ----------------------------------------------------------------------------
# helpers
# ----------------------------------------------------------------------------
def _round_up(x, m):
    return ((x + m - 1) // m) * m


def init_params(key, embed_dim, sample_size):
    """Deterministic PyTorch-Linear-style init; weights stored (in, out)."""
    ks = jax.random.split(key, 7)

    def lin(k, fan_in, fan_out):
        kw, kb = jax.random.split(k)
        bound = 1.0 / np.sqrt(fan_in)
        w = jax.random.uniform(kw, (fan_in, fan_out), jnp.float32, -bound, bound)
        b = jax.random.uniform(kb, (fan_out,), jnp.float32, -bound, bound)
        return w, b

    D, S = embed_dim, sample_size
    p = {}
    p['w_init'], p['b_init'] = lin(ks[0], 2, D)
    p['w_row'], p['b_row'] = lin(ks[1], S, D)
    p['w_col'], p['b_col'] = lin(ks[2], S, D)
    p['w1_row'], p['b1_row'] = lin(ks[3], 2 * D, 2 * D)
    p['w2_row'], p['b2_row'] = lin(ks[4], 2 * D, 1)
    p['w1_col'], p['b1_col'] = lin(ks[5], 2 * D, 2 * D)
    p['w2_col'], p['b2_col'] = lin(ks[6], 2 * D, 1)
    return p


def sample_indices_prob(key, distance, sample_size):
    """sample_type='prob' path of _sample_indices."""
    # TODO(synk): torch.multinomial(replacement=False) RNG stream cannot be
    # matched bit-for-bit; reproduced in distribution via Gumbel-top-k.
    B, N, _ = distance.shape
    eye = jnp.eye(N, dtype=bool)
    pd = jnp.where(eye[None, :, :], 1e6, distance)
    inv = 1.0 / (pd + 1e-6)
    probs = inv / inv.sum(axis=-1, keepdims=True)
    g = jax.random.gumbel(key, (B, N, N), dtype=jnp.float32)
    _, idx = jax.lax.top_k(jnp.log(probs) + g, sample_size)
    return idx  # (B, N, sample_size)


def _gather_sorted_distances(locs, distance, sample_size, sample_key):
    idx = sample_indices_prob(sample_key, distance, sample_size)
    row_d = jnp.take_along_axis(distance, idx, axis=2)
    col_d = jnp.take_along_axis(jnp.swapaxes(distance, 1, 2), idx, axis=2)
    row_d = jnp.sort(row_d, axis=-1)
    col_d = jnp.sort(col_d, axis=-1)
    return row_d, col_d


# ----------------------------------------------------------------------------
# Forward wrapper
# ----------------------------------------------------------------------------
def atsp_init_embedding(locs, distance, params, sample_size, sample_key, tm=512):
    """(locs (B,N,2), distance (B,N,N)) -> (row_emb, col_emb, distance)."""
    locs = locs.astype(jnp.float32)
    distance = distance.astype(jnp.float32)
    B, N, _ = locs.shape
    D = params['w_init'].shape[1]
    S = sample_size
    Sp = _round_up(S, 8)
    C = 8 + 2 * Sp                      # packed per-row input width

    row_d, col_d = _gather_sorted_distances(locs, distance, S, sample_key)

    # Row tiling: big tile, but keep >=2 grid steps so v7x can shard the grid.
    M = B * N
    Mp8 = _round_up(M, 8)
    tm_eff = max(8, min(tm, _round_up((Mp8 + 1) // 2, 8)))
    Mp = _round_up(Mp8, tm_eff)

    # One lane-dense per-row stream: [locs(2) pad->8 | row_d pad->Sp | col_d pad->Sp]
    locs_f = jnp.pad(locs.reshape(M, 2), ((0, Mp - M), (0, 8 - 2)))
    row_f = jnp.pad(row_d.reshape(M, S), ((0, Mp - M), (0, Sp - S)))
    col_f = jnp.pad(col_d.reshape(M, S), ((0, Mp - M), (0, Sp - S)))
    x = jnp.concatenate([locs_f, row_f, col_f], axis=-1)        # (Mp, C)

    # Packed stage-1 weight: block-diagonal [w_init | w_row | w_col] -> (C, 3D)
    W0 = jnp.zeros((C, 3 * D), jnp.float32)
    W0 = W0.at[0:2, 0:D].set(params['w_init'])
    W0 = W0.at[8:8 + S, D:2 * D].set(params['w_row'])
    W0 = W0.at[8 + Sp:8 + Sp + S, 2 * D:3 * D].set(params['w_col'])
    b0 = jnp.concatenate(
        [params['b_init'], params['b_row'], params['b_col']])[None, :]   # (1,3D)

    # Packed stage-2 (gating hidden) weight: (3D, 4D)
    W1 = jnp.zeros((3 * D, 4 * D), jnp.float32)
    W1 = W1.at[0:D, 0:2 * D].set(params['w1_row'][:D])       # coord -> row gate
    W1 = W1.at[0:D, 2 * D:].set(params['w1_col'][:D])        # coord -> col gate
    W1 = W1.at[D:2 * D, 0:2 * D].set(params['w1_row'][D:])   # row_emb -> row gate
    W1 = W1.at[2 * D:, 2 * D:].set(params['w1_col'][D:])     # col_emb -> col gate
    b1 = jnp.concatenate([params['b1_row'], params['b1_col']])[None, :]  # (1,4D)

    w2 = jnp.concatenate(
        [params['w2_row'][:, 0], params['w2_col'][:, 0]])[None, :]       # (1,4D)
    b2 = jnp.concatenate([params['b2_row'], params['b2_col']])[None, :]  # (1,2)

    kernel = functools.partial(_atsp_embed_kernel, D=D)

    row_spec = pl.BlockSpec((tm_eff, C), lambda i: (i, 0))
    out_spec = pl.BlockSpec((tm_eff, 2 * D), lambda i: (i, 0))
    full = lambda shape: pl.BlockSpec(shape, lambda i: (0, 0))

    out = pl.pallas_call(
        kernel,
        out_shape=jax.ShapeDtypeStruct((Mp, 2 * D), jnp.float32),
        grid_spec=pltpu.PrefetchScalarGridSpec(
            num_scalar_prefetch=0,
            grid=(Mp // tm_eff,),
            in_specs=[row_spec,
                      full(W0.shape), full(b0.shape),
                      full(W1.shape), full(b1.shape),
                      full(w2.shape), full(b2.shape)],
            out_specs=out_spec,
        ),
        compiler_params=pltpu.CompilerParams(
            dimension_semantics=("parallel",)),
    )(x, W0, b0, W1, b1, w2, b2)

    out_row = out[:M, :D].reshape(B, N, D)
    out_col = out[:M, D:].reshape(B, N, D)
    return out_row, out_col, distance


# ----------------------------------------------------------------------------
# Pure-JAX reference (same math, same sampled indices) for correctness check
# ----------------------------------------------------------------------------
def reference_forward(locs, distance, params, sample_size, sample_key):
    locs = locs.astype(jnp.float32)
    distance = distance.astype(jnp.float32)
    row_d, col_d = _gather_sorted_distances(locs, distance, sample_size, sample_key)

    coord = locs @ params['w_init'] + params['b_init']
    row_emb = row_d @ params['w_row'] + params['b_row']
    col_emb = col_d @ params['w_col'] + params['b_col']

    def gate(coord_f, emb_f, w1, b1, w2, b2):
        cat = jnp.concatenate([coord_f, emb_f], axis=-1)
        h = jax.nn.relu(cat @ w1 + b1)
        g = jax.nn.sigmoid(h @ w2 + b2)
        return g * coord_f + (1.0 - g) * emb_f

    out_row = gate(coord, row_emb, params['w1_row'], params['b1_row'],
                   params['w2_row'], params['b2_row'])
    out_col = gate(coord, col_emb, params['w1_col'], params['b1_col'],
                   params['w2_col'], params['b2_col'])
    return out_row, out_col


if __name__ == "__main__":
    key = jax.random.PRNGKey(0)
    k_locs, k_dist, k_param, k_sample = jax.random.split(key, 4)

    B, N, D, S = 2, 32, 32, 25   # N >= sample_size (replacement-free sampling)
    locs = jax.random.uniform(k_locs, (B, N, 2), dtype=jnp.float32)
    dist = jax.random.uniform(k_dist, (B, N, N), dtype=jnp.float32)
    dist = dist * (1.0 - jnp.eye(N, dtype=jnp.float32))  # zero diagonal

    params = init_params(k_param, D, S)

    out_row, out_col, dist_out = atsp_init_embedding(locs, dist, params, S, k_sample)
    jax.block_until_ready((out_row, out_col, dist_out))

    ref_row, ref_col = reference_forward(locs, dist, params, S, k_sample)
    np.testing.assert_allclose(np.asarray(out_row), np.asarray(ref_row),
                               rtol=1e-4, atol=1e-4)
    np.testing.assert_allclose(np.asarray(out_col), np.asarray(ref_col),
                               rtol=1e-4, atol=1e-4)
    np.testing.assert_allclose(np.asarray(dist_out), np.asarray(dist),
                               rtol=0, atol=0)

    print("KERNEL_OK")
</pallas_src>

<mosaic_0001>
module attributes {stable_mosaic.version = 11 : i64} {
  func.func @_atsp_embed_kernel(%arg0: i32, %arg1: memref<32x72xf32, #tpu.memory_space<vmem>>, %arg2: memref<72x96xf32, #tpu.memory_space<vmem>>, %arg3: memref<1x96xf32, #tpu.memory_space<vmem>>, %arg4: memref<96x128xf32, #tpu.memory_space<vmem>>, %arg5: memref<1x128xf32, #tpu.memory_space<vmem>>, %arg6: memref<1x128xf32, #tpu.memory_space<vmem>>, %arg7: memref<1x2xf32, #tpu.memory_space<vmem>>, %arg8: memref<32x64xf32, #tpu.memory_space<vmem>>) attributes {dimension_semantics = [#tpu.dimension_semantics<parallel>], iteration_bounds = array<i64: 2>, scalar_prefetch = 0 : i64, scratch_operands = 0 : i64, tpu.core_type = #tpu.core_type<tc>, window_params = [{transform_indices = @transform_0, window_bounds = array<i64: 32, 72>}, {pipeline_mode = #tpu.pipeline_mode<synchronous>, transform_indices = @transform_1, window_bounds = array<i64: 72, 96>}, {pipeline_mode = #tpu.pipeline_mode<synchronous>, transform_indices = @transform_2, window_bounds = array<i64: 1, 96>}, {pipeline_mode = #tpu.pipeline_mode<synchronous>, transform_indices = @transform_3, window_bounds = array<i64: 96, 128>}, {pipeline_mode = #tpu.pipeline_mode<synchronous>, transform_indices = @transform_4, window_bounds = array<i64: 1, 128>}, {pipeline_mode = #tpu.pipeline_mode<synchronous>, transform_indices = @transform_5, window_bounds = array<i64: 1, 128>}, {pipeline_mode = #tpu.pipeline_mode<synchronous>, transform_indices = @transform_6, window_bounds = array<i64: 1, 2>}, {transform_indices = @transform_7, window_bounds = array<i64: 32, 64>}]} {
    %c0 = arith.constant 0 : index
    %c0_0 = arith.constant 0 : index
    %0 = vector.load %arg1[%c0, %c0_0] : memref<32x72xf32, #tpu.memory_space<vmem>>, vector<32x72xf32>
    %c0_1 = arith.constant 0 : index
    %c0_2 = arith.constant 0 : index
    %1 = vector.load %arg2[%c0_1, %c0_2] : memref<72x96xf32, #tpu.memory_space<vmem>>, vector<72x96xf32>
    %cst = arith.constant dense<0.000000e+00> : vector<32x96xf32>
    %2 = tpu.matmul %0, %1, %cst {dimension_numbers = #tpu.dot_dimension_numbers<[1], [0], [0], [1], [0, 0, 1, 1], [], []>} : vector<32x72xf32>, vector<72x96xf32>, vector<32x96xf32> -> vector<32x96xf32>
    %c0_3 = arith.constant 0 : index
    %c0_4 = arith.constant 0 : index
    %3 = vector.load %arg3[%c0_3, %c0_4] : memref<1x96xf32, #tpu.memory_space<vmem>>, vector<1x96xf32>
    %4 = vector.broadcast %3 : vector<1x96xf32> to vector<32x96xf32>
    %5 = arith.addf %2, %4 : vector<32x96xf32>
    %c0_5 = arith.constant 0 : index
    %c0_6 = arith.constant 0 : index
    %6 = vector.load %arg4[%c0_5, %c0_6] : memref<96x128xf32, #tpu.memory_space<vmem>>, vector<96x128xf32>
    %cst_7 = arith.constant dense<0.000000e+00> : vector<32x128xf32>
    %7 = tpu.matmul %5, %6, %cst_7 {dimension_numbers = #tpu.dot_dimension_numbers<[1], [0], [0], [1], [0, 0, 1, 1], [], []>} : vector<32x96xf32>, vector<96x128xf32>, vector<32x128xf32> -> vector<32x128xf32>
    %c0_8 = arith.constant 0 : index
    %c0_9 = arith.constant 0 : index
    %8 = vector.load %arg5[%c0_8, %c0_9] : memref<1x128xf32, #tpu.memory_space<vmem>>, vector<1x128xf32>
    %9 = vector.broadcast %8 : vector<1x128xf32> to vector<32x128xf32>
    %10 = arith.addf %7, %9 : vector<32x128xf32>
    %cst_10 = arith.constant 0.000000e+00 : f32
    %11 = vector.broadcast %cst_10 : f32 to vector<32x128xf32>
    %12 = arith.maximumf %10, %11 : vector<32x128xf32>
    %c0_11 = arith.constant 0 : index
    %c0_12 = arith.constant 0 : index
    %13 = vector.load %arg6[%c0_11, %c0_12] : memref<1x128xf32, #tpu.memory_space<vmem>>, vector<1x128xf32>
    %14 = vector.broadcast %13 : vector<1x128xf32> to vector<32x128xf32>
    %15 = arith.mulf %12, %14 : vector<32x128xf32>
    %16 = vector.extract_strided_slice %15 {offsets = [0, 0], sizes = [32, 64], strides = [1, 1]} : vector<32x128xf32> to vector<32x64xf32>
    %cst_13 = arith.constant dense<0.000000e+00> : vector<32xf32>
    %17 = vector.multi_reduction <add>, %16, %cst_13 [1] : vector<32x64xf32> to vector<32xf32>
    %18 = vector.shape_cast %17 : vector<32xf32> to vector<32x1xf32>
    %19 = vector.extract_strided_slice %15 {offsets = [0, 64], sizes = [32, 64], strides = [1, 1]} : vector<32x128xf32> to vector<32x64xf32>
    %cst_14 = arith.constant dense<0.000000e+00> : vector<32xf32>
    %20 = vector.multi_reduction <add>, %19, %cst_14 [1] : vector<32x64xf32> to vector<32xf32>
    %21 = vector.shape_cast %20 : vector<32xf32> to vector<32x1xf32>
    %c0_15 = arith.constant 0 : index
    %c0_16 = arith.constant 0 : index
    %22 = vector.load %arg7[%c0_15, %c0_16] : memref<1x2xf32, #tpu.memory_space<vmem>>, vector<1x2xf32>
    %23 = vector.extract_strided_slice %22 {offsets = [0, 0], sizes = [1, 1], strides = [1, 1]} : vector<1x2xf32> to vector<1x1xf32>
    %24 = vector.broadcast %23 : vector<1x1xf32> to vector<32x1xf32>
    %25 = arith.addf %18, %24 : vector<32x1xf32>
    %26 = arith.negf %25 : vector<32x1xf32>
    %27 = math.exp %26 : vector<32x1xf32>
    %cst_17 = arith.constant 1.000000e+00 : f32
    %28 = vector.broadcast %cst_17 : f32 to vector<32x1xf32>
    %29 = arith.addf %28, %27 : vector<32x1xf32>
    %30 = arith.divf %28, %29 : vector<32x1xf32>
    %31 = vector.extract_strided_slice %22 {offsets = [0, 1], sizes = [1, 1], strides = [1, 1]} : vector<1x2xf32> to vector<1x1xf32>
    %32 = vector.broadcast %31 : vector<1x1xf32> to vector<32x1xf32>
    %33 = arith.addf %21, %32 : vector<32x1xf32>
    %34 = arith.negf %33 : vector<32x1xf32>
    %35 = math.exp %34 : vector<32x1xf32>
    %cst_18 = arith.constant 1.000000e+00 : f32
    %36 = vector.broadcast %cst_18 : f32 to vector<32x1xf32>
    %37 = arith.addf %36, %35 : vector<32x1xf32>
    %38 = arith.divf %36, %37 : vector<32x1xf32>
    %39 = vector.extract_strided_slice %5 {offsets = [0, 0], sizes = [32, 32], strides = [1, 1]} : vector<32x96xf32> to vector<32x32xf32>
    %40 = vector.extract_strided_slice %5 {offsets = [0, 32], sizes = [32, 32], strides = [1, 1]} : vector<32x96xf32> to vector<32x32xf32>
    %41 = vector.extract_strided_slice %5 {offsets = [0, 64], sizes = [32, 32], strides = [1, 1]} : vector<32x96xf32> to vector<32x32xf32>
    %42 = vector.broadcast %30 : vector<32x1xf32> to vector<32x32xf32>
    %43 = arith.mulf %42, %39 : vector<32x32xf32>
    %cst_19 = arith.constant 1.000000e+00 : f32
    %44 = vector.broadcast %cst_19 : f32 to vector<32x1xf32>
    %45 = arith.subf %44, %30 : vector<32x1xf32>
    %46 = vector.broadcast %45 : vector<32x1xf32> to vector<32x32xf32>
    %47 = arith.mulf %46, %40 : vector<32x32xf32>
    %48 = arith.addf %43, %47 : vector<32x32xf32>
    %49 = vector.broadcast %38 : vector<32x1xf32> to vector<32x32xf32>
    %50 = arith.mulf %49, %39 : vector<32x32xf32>
    %cst_20 = arith.constant 1.000000e+00 : f32
    %51 = vector.broadcast %cst_20 : f32 to vector<32x1xf32>
    %52 = arith.subf %51, %38 : vector<32x1xf32>
    %53 = vector.broadcast %52 : vector<32x1xf32> to vector<32x32xf32>
    %54 = arith.mulf %53, %41 : vector<32x32xf32>
    %55 = arith.addf %50, %54 : vector<32x32xf32>
    %56 = tpu.concatenate %48, %55 in 1 : vector<32x32xf32>, vector<32x32xf32> -> vector<32x64xf32>
    %c0_21 = arith.constant 0 : index
    %c0_22 = arith.constant 0 : index
    %57 = vector.load %arg8[%c0_21, %c0_22] : memref<32x64xf32, #tpu.memory_space<vmem>>, vector<32x64xf32>
    tpu.vector_store %arg8[%c0_21, %c0_22], %56 {strides = array<i32>} : memref<32x64xf32, #tpu.memory_space<vmem>>, vector<32x64xf32>,
    return
  }
  func.func @transform_0(%arg0: i32) -> (i32, i32) {
    %c0_i32 = arith.constant 0 : i32
    %c0_i32_0 = arith.constant 0 : i32
    return %arg0, %c0_i32 : i32, i32
  }
  func.func @transform_1(%arg0: i32) -> (i32, i32) {
    %c0_i32 = arith.constant 0 : i32
    %c0_i32_0 = arith.constant 0 : i32
    %c0_i32_1 = arith.constant 0 : i32
    return %c0_i32, %c0_i32_0 : i32, i32
  }
  func.func @transform_2(%arg0: i32) -> (i32, i32) {
    %c0_i32 = arith.constant 0 : i32
    %c0_i32_0 = arith.constant 0 : i32
    %c0_i32_1 = arith.constant 0 : i32
    return %c0_i32, %c0_i32_0 : i32, i32
  }
  func.func @transform_3(%arg0: i32) -> (i32, i32) {
    %c0_i32 = arith.constant 0 : i32
    %c0_i32_0 = arith.constant 0 : i32
    %c0_i32_1 = arith.constant 0 : i32
    return %c0_i32, %c0_i32_0 : i32, i32
  }
  func.func @transform_4(%arg0: i32) -> (i32, i32) {
    %c0_i32 = arith.constant 0 : i32
    %c0_i32_0 = arith.constant 0 : i32
    %c0_i32_1 = arith.constant 0 : i32
    return %c0_i32, %c0_i32_0 : i32, i32
  }
  func.func @transform_5(%arg0: i32) -> (i32, i32) {
    %c0_i32 = arith.constant 0 : i32
    %c0_i32_0 = arith.constant 0 : i32
    %c0_i32_1 = arith.constant 0 : i32
    return %c0_i32, %c0_i32_0 : i32, i32
  }
  func.func @transform_6(%arg0: i32) -> (i32, i32) {
    %c0_i32 = arith.constant 0 : i32
    %c0_i32_0 = arith.constant 0 : i32
    %c0_i32_1 = arith.constant 0 : i32
    return %c0_i32, %c0_i32_0 : i32, i32
  }
  func.func @transform_7(%arg0: i32) -> (i32, i32) {
    %c0_i32 = arith.constant 0 : i32
    %c0_i32_0 = arith.constant 0 : i32
    return %arg0, %c0_i32 : i32, i32
  }
}

</mosaic_0001>

<llo_original>
// kernel: tpu_custom_call.1
$region0: #{tpu_custom_call.1}
  #allocation0 [shape = 'u32[]', space=smem, size = 0x4, offset = 0x4, fixed_abs, tag = 'smem constant byte address 0x4 - core index']
  #allocation1 [shape = 'u32[144,128]{1,0:T(1,128)}', space=vmem, size = 0x12000, scoped, tag = 'internal scratch']
  %s0 = inlined_call_operand.hbm [shape: f32[64,72], index: 0, kind: input, shape index: {}]
  %s1 = inlined_call_operand.hbm [shape: f32[72,96], index: 1, kind: input, shape index: {}]
  %s2 = inlined_call_operand.vmem [shape: f32[1,96], index: 2, kind: input, shape index: {}]
  %s3 = inlined_call_operand.hbm [shape: f32[96,128], index: 3, kind: input, shape index: {}]
  %s4 = inlined_call_operand.vmem [shape: f32[1,128], index: 4, kind: input, shape index: {}]
  %s5 = inlined_call_operand.vmem [shape: f32[1,128], index: 5, kind: input, shape index: {}]
  %s6 = inlined_call_operand.vmem [shape: f32[1,2], index: 6, kind: input, shape index: {}]
  %s7 = inlined_call_operand.hbm [shape: f32[64,64], index: 7, kind: output, shape index: {}]
  %s8 = sld [smem:[#allocation0]]
  $region73: #{tpu_custom_call.1} parent=0
    _
  %s10 = ssub.s32 1, %s8
  %s11 = scalar_select 0, %s10, %s8
  $region1: #{tpu_custom_call.1} parent=0
    #allocation2 [shape = 'u8[32768]{0}', space=vmem, size = 0x8000, scoped, tag = 'input window, operand 0']
    #allocation3 [shape = 's32[2]{0}', space=sflag, size = 0x8, scoped, tag = 'scoped memory for tpu_custom_call.1']
    #allocation4 [shape = 's32[2]{0}', space=sflag, size = 0x8, scoped, tag = 'scoped memory for tpu_custom_call.1']
    #allocation5 [shape = 'u8[36864]{0}', space=vmem, size = 0x9000, scoped, tag = 'input window, operand 1, single buffered']
    #allocation6 [shape = 's32[1]{0}', space=sflag, size = 0x4, scoped, tag = 'scoped memory for tpu_custom_call.1']
    #allocation7 [shape = 'u8[49152]{0}', space=vmem, size = 0xc000, scoped, tag = 'input window, operand 3, single buffered']
    #allocation8 [shape = 'u8[32768]{0}', space=vmem, size = 0x8000, scoped, tag = 'output window, operand 0']
    %12 = vsyncpa [#allocation3], 0
    %s13 = scalar_lea.sflag [#allocation3], 1
    %14 = vsyncpa %s13, 0
    %15 = vsyncpa [#allocation6], 0
    %16 = vsyncpa [#allocation4], 0
    %s17 = scalar_lea.sflag [#allocation4], 1
    %18 = vsyncpa %s17, 0
    loop: start=0, step=1, limit=4
    $region2: #{tpu_custom_call.1} parent=1 // loop_pre_header
      _
    $region3: #{tpu_custom_call.1} parent=1 // loop_header
      %s20 = sphi 0, %s24
      %p21 = scmp.ge.s32.totalorder %s20, 4
      %s30 = sphi 0, %s32
      %s33 = sphi 0, %s30
      %s34 = sphi 0, %s33
      %s50 = sphi 0, %s34
      %s54 = sphi 0, %s54
      %s56 = sphi 0, %s54
      %s57 = sphi 0, %s56
      %s71 = sphi 0, %s57
      %s75 = sphi 0, %s75
      %s77 = sphi 0, %s75
      %s78 = sphi 0, %s77
      %s92 = sphi 0, %s78
      %s96 = sphi 0, %s96
      %s98 = sphi 0, %s96
      %s99 = sphi 0, %s98
      %s113 = sphi 0, %s99
      %s117 = sphi 0, %s117
      %s119 = sphi 0, %s117
      %s120 = sphi 0, %s119
      %s134 = sphi 0, %s120
      %s138 = sphi 0, %s138
      %s140 = sphi 0, %s138
      %s141 = sphi 0, %s140
      %s155 = sphi 0, %s141
      %s159 = sphi 0, %s159
      %s161 = sphi 0, %s159
      %s162 = sphi 0, %s161
      %s176 = sphi 0, %s162
      %s182 = sphi 0, %s184
      %s185 = sphi 0, %s182
      %s186 = sphi 0, %s185
      %s202 = sphi 0, %s186
    $region4: #{tpu_custom_call.1} parent=1 // loop_header_branch
      %23 = sbr.rel (%p21) target = $region8
    $region5: #{tpu_custom_call.1} parent=1 // loop_body
      %s25 = ssub.s32 %s20, 1
      %s26 = ssub.s32 %s20, 2
      %s27 = sadd.s32 %s20, 1
      %s28 = ssub.s32 %s20, %s27
      %p29 = scmp.eq.s32.totalorder %s28, 0
      %s31 = sadd.s32 %s30, 1
      %s32 = scalar_select %p29, %s30, %s31
      %p35 = pneg %p29
      %p36 = scmp.eq.s32.totalorder %s20, 1
      %p37 = por %p35, %p36
      %p38 = scmp.ne.s32.totalorder %s30, %s33
      %p39 = scmp.eq.s32.totalorder %s20, 0
      %p40 = por %p38, %p39
      %p41 = scmp.ne.s32.totalorder %s30, %s33
      %p42 = scmp.eq.s32.totalorder %s25, 1
      %p43 = por %p41, %p42
      %p44 = scmp.ne.s32.totalorder %s33, %s34
      %p45 = scmp.eq.s32.totalorder %s25, 0
      %p46 = por %p44, %p45
      %p47 = scmp.ne.s32.totalorder %s33, %s34
      %p48 = scmp.eq.s32.totalorder %s26, 1
      %p49 = por %p47, %p48
      %p51 = scmp.ne.s32.totalorder %s34, %s50
      %p52 = scmp.eq.s32.totalorder %s26, 0
      %p53 = por %p51, %p52
      %s55 = sadd.s32 %s54, 1
      %p58 = scmp.eq.s32.totalorder %s20, 1
      %p59 = scmp.ne.s32.totalorder %s54, %s56
      %p60 = scmp.eq.s32.totalorder %s20, 0
      %p61 = por %p59, %p60
      %p62 = scmp.ne.s32.totalorder %s54, %s56
      %p63 = scmp.eq.s32.totalorder %s25, 1
      %p64 = por %p62, %p63
      %p65 = scmp.ne.s32.totalorder %s56, %s57
      %p66 = scmp.eq.s32.totalorder %s25, 0
      %p67 = por %p65, %p66
      %p68 = scmp.ne.s32.totalorder %s56, %s57
      %p69 = scmp.eq.s32.totalorder %s26, 1
      %p70 = por %p68, %p69
      %p72 = scmp.ne.s32.totalorder %s57, %s71
      %p73 = scmp.eq.s32.totalorder %s26, 0
      %p74 = por %p72, %p73
      %s76 = sadd.s32 %s75, 1
      %p79 = scmp.eq.s32.totalorder %s20, 1
      %p80 = scmp.ne.s32.totalorder %s75, %s77
      %p81 = scmp.eq.s32.totalorder %s20, 0
      %p82 = por %p80, %p81
      %p83 = scmp.ne.s32.totalorder %s75, %s77
      %p84 = scmp.eq.s32.totalorder %s25, 1
      %p85 = por %p83, %p84
      %p86 = scmp.ne.s32.totalorder %s77, %s78
      %p87 = scmp.eq.s32.totalorder %s25, 0
      %p88 = por %p86, %p87
      %p89 = scmp.ne.s32.totalorder %s77, %s78
      %p90 = scmp.eq.s32.totalorder %s26, 1
      %p91 = por %p89, %p90
      %p93 = scmp.ne.s32.totalorder %s78, %s92
      %p94 = scmp.eq.s32.totalorder %s26, 0
      %p95 = por %p93, %p94
      %s97 = sadd.s32 %s96, 1
      %p100 = scmp.eq.s32.totalorder %s20, 1
      %p101 = scmp.ne.s32.totalorder %s96, %s98
      %p102 = scmp.eq.s32.totalorder %s20, 0
      %p103 = por %p101, %p102
      %p104 = scmp.ne.s32.totalorder %s96, %s98
      %p105 = scmp.eq.s32.totalorder %s25, 1
      %p106 = por %p104, %p105
      %p107 = scmp.ne.s32.totalorder %s98, %s99
      %p108 = scmp.eq.s32.totalorder %s25, 0
      %p109 = por %p107, %p108
      %p110 = scmp.ne.s32.totalorder %s98, %s99
      %p111 = scmp.eq.s32.totalorder %s26, 1
      %p112 = por %p110, %p111
      %p114 = scmp.ne.s32.totalorder %s99, %s113
      %p115 = scmp.eq.s32.totalorder %s26, 0
      %p116 = por %p114, %p115
      %s118 = sadd.s32 %s117, 1
      %p121 = scmp.eq.s32.totalorder %s20, 1
      %p122 = scmp.ne.s32.totalorder %s117, %s119
      %p123 = scmp.eq.s32.totalorder %s20, 0
      %p124 = por %p122, %p123
      %p125 = scmp.ne.s32.totalorder %s117, %s119
      %p126 = scmp.eq.s32.totalorder %s25, 1
      %p127 = por %p125, %p126
      %p128 = scmp.ne.s32.totalorder %s119, %s120
      %p129 = scmp.eq.s32.totalorder %s25, 0
      %p130 = por %p128, %p129
      %p131 = scmp.ne.s32.totalorder %s119, %s120
      %p132 = scmp.eq.s32.totalorder %s26, 1
      %p133 = por %p131, %p132
      %p135 = scmp.ne.s32.totalorder %s120, %s134
      %p136 = scmp.eq.s32.totalorder %s26, 0
      %p137 = por %p135, %p136
      %s139 = sadd.s32 %s138, 1
      %p142 = scmp.eq.s32.totalorder %s20, 1
      %p143 = scmp.ne.s32.totalorder %s138, %s140
      %p144 = scmp.eq.s32.totalorder %s20, 0
      %p145 = por %p143, %p144
      %p146 = scmp.ne.s32.totalorder %s138, %s140
      %p147 = scmp.eq.s32.totalorder %s25, 1
      %p148 = por %p146, %p147
      %p149 = scmp.ne.s32.totalorder %s140, %s141
      %p150 = scmp.eq.s32.totalorder %s25, 0
      %p151 = por %p149, %p150
      %p152 = scmp.ne.s32.totalorder %s140, %s141
      %p153 = scmp.eq.s32.totalorder %s26, 1
      %p154 = por %p152, %p153
      %p156 = scmp.ne.s32.totalorder %s141, %s155
      %p157 = scmp.eq.s32.totalorder %s26, 0
      %p158 = por %p156, %p157
      %s160 = sadd.s32 %s159, 1
      %p163 = scmp.eq.s32.totalorder %s20, 1
      %p164 = scmp.ne.s32.totalorder %s159, %s161
      %p165 = scmp.eq.s32.totalorder %s20, 0
      %p166 = por %p164, %p165
      %p167 = scmp.ne.s32.totalorder %s159, %s161
      %p168 = scmp.eq.s32.totalorder %s25, 1
      %p169 = por %p167, %p168
      %p170 = scmp.ne.s32.totalorder %s161, %s162
      %p171 = scmp.eq.s32.totalorder %s25, 0
      %p172 = por %p170, %p171
      %p173 = scmp.ne.s32.totalorder %s161, %s162
      %p174 = scmp.eq.s32.totalorder %s26, 1
      %p175 = por %p173, %p174
      %p177 = scmp.ne.s32.totalorder %s162, %s176
      %p178 = scmp.eq.s32.totalorder %s26, 0
      %p179 = por %p177, %p178
      %s180 = ssub.s32 %s20, %s27
      %p181 = scmp.eq.s32.totalorder %s180, 0
      %s183 = sadd.s32 %s182, 1
      %s184 = scalar_select %p181, %s182, %s183
      %p187 = pneg %p181
      %p188 = scmp.eq.s32.totalorder %s20, 1
      %p189 = por %p187, %p188
      %p190 = scmp.ne.s32.totalorder %s182, %s185
      %p191 = scmp.eq.s32.totalorder %s20, 0
      %p192 = por %p190, %p191
      %p193 = scmp.ne.s32.totalorder %s182, %s185
      %p194 = scmp.eq.s32.totalorder %s25, 1
      %p195 = por %p193, %p194
      %p196 = scmp.ne.s32.totalorder %s185, %s186
      %p197 = scmp.eq.s32.totalorder %s25, 0
      %p198 = por %p196, %p197
      %p199 = scmp.ne.s32.totalorder %s185, %s186
      %p200 = scmp.eq.s32.totalorder %s26, 1
      %p201 = por %p199, %p200
      %p203 = scmp.ne.s32.totalorder %s186, %s202
      %p204 = scmp.eq.s32.totalorder %s26, 0
      %p205 = por %p203, %p204
      %p206 = scmp.le.s32.totalorder 1, %s20
      %p207 = scmp.lt.s32.totalorder %s20, 3
      %p208 = pnand %p206, %p207
      %p209 = pneg %p208
      // Predicated region
      $region9: #{tpu_custom_call.1} parent=5 // pred_check
        _
      $region10: #{tpu_custom_call.1} parent=5 // pred_check_branch
        %211 = sbr.rel (%p208) target = $region12
      $region11: #{tpu_custom_call.1} parent=5 // pred_region
        %s212 = ssub.s32 %s20, 1
        // Predicated region
        $region13: #{tpu_custom_call.1} parent=11 // pred_check
          %p213 = pneg %p67
        $region14: #{tpu_custom_call.1} parent=11 // pred_check_branch
          %215 = sbr.rel (%p213) target = $region16
        $region15: #{tpu_custom_call.1} parent=11 // pred_region
          %s217 = ssub.s32 1152, 1152
          %218 = vsyncadd [#allocation6], %s217
          %s219 = sshll.u32 [#allocation5], 4
          %s220 = int_to_ptr.vmem [resolvable:$true] %s219
          %225 = dma.hbm_to_vmem [thread:$0]  %s1, 1152, %s220, [#allocation6], 128, 128, 8
        $region16: #{tpu_custom_call.1} parent=11 // pred_fallthru
          _
        // Predicated region
        $region17: #{tpu_custom_call.1} parent=11 // pred_check
          %p226 = pneg %p88
        $region18: #{tpu_custom_call.1} parent=11 // pred_check_branch
          %228 = sbr.rel (%p226) target = $region20
        $region19: #{tpu_custom_call.1} parent=11 // pred_region
          _
        $region20: #{tpu_custom_call.1} parent=11 // pred_fallthru
          _
        // Predicated region
        $region21: #{tpu_custom_call.1} parent=11 // pred_check
          %p229 = pneg %p109
        $region22: #{tpu_custom_call.1} parent=11 // pred_check_branch
          %231 = sbr.rel (%p229) target = $region24
        $region23: #{tpu_custom_call.1} parent=11 // pred_region
          %s233 = ssub.s32 1536, 1536
          %234 = vsyncadd [#allocation6], %s233
          %s235 = sshll.u32 [#allocation7], 4
          %s236 = int_to_ptr.vmem [resolvable:$true] %s235
          %241 = dma.hbm_to_vmem [thread:$0]  %s3, 1536, %s236, [#allocation6], 128, 128, 8
        $region24: #{tpu_custom_call.1} parent=11 // pred_fallthru
          _
        // Predicated region
        $region25: #{tpu_custom_call.1} parent=11 // pred_check
          %p242 = pneg %p130
        $region26: #{tpu_custom_call.1} parent=11 // pred_check_branch
          %244 = sbr.rel (%p242) target = $region28
        $region27: #{tpu_custom_call.1} parent=11 // pred_region
          _
        $region28: #{tpu_custom_call.1} parent=11 // pred_fallthru
          _
        // Predicated region
        $region29: #{tpu_custom_call.1} parent=11 // pred_check
          %p245 = pneg %p151
        $region30: #{tpu_custom_call.1} parent=11 // pred_check_branch
          %247 = sbr.rel (%p245) target = $region32
        $region31: #{tpu_custom_call.1} parent=11 // pred_region
          _
        $region32: #{tpu_custom_call.1} parent=11 // pred_fallthru
          _
        // Predicated region
        $region33: #{tpu_custom_call.1} parent=11 // pred_check
          %p248 = pneg %p172
        $region34: #{tpu_custom_call.1} parent=11 // pred_check_branch
          %250 = sbr.rel (%p248) target = $region36
        $region35: #{tpu_custom_call.1} parent=11 // pred_region
          _
        $region36: #{tpu_custom_call.1} parent=11 // pred_fallthru
          _
      $region12: #{tpu_custom_call.1} parent=5 // pred_fallthru
        _
      %p251 = scmp.lt.s32.totalorder %s20, 2
      // Predicated region
      $region37: #{tpu_custom_call.1} parent=5 // pred_check
        %p252 = pneg %p251
      $region38: #{tpu_custom_call.1} parent=5 // pred_check_branch
        %254 = sbr.rel (%p252) target = $region40
      $region39: #{tpu_custom_call.1} parent=5 // pred_region
        // Predicated region
        $region41: #{tpu_custom_call.1} parent=39 // pred_check
          %p255 = pneg %p40
        $region42: #{tpu_custom_call.1} parent=39 // pred_check_branch
          %257 = sbr.rel (%p255) target = $region44
        $region43: #{tpu_custom_call.1} parent=39 // pred_region
          %s258 = sand.u32 %s30, 1
          %s259 = scalar_lea.sflag [#allocation3], %s258
          %s260 = sand.u32 %s30, 1
          %s261 = smul.addr %s260, 32
          %s262 = scalar_lea.vmem [#allocation2], %s261
          %s263 = smul.u32 4, %s20
          %s265 = ssub.s32 512, 512
          %266 = vsyncadd %s259, %s265
          %s267 = smul.addr %s263, 128
          %s268 = scalar_lea.hbm %s0, %s267
          %s269 = sshll.u32 %s262, 4
          %s270 = int_to_ptr.vmem [resolvable:$true] %s269
          %275 = dma.hbm_to_vmem [thread:$0]  %s268, 512, %s270, %s259, 128, 128, 8
        $region44: #{tpu_custom_call.1} parent=39 // pred_fallthru
          _
      $region40: #{tpu_custom_call.1} parent=5 // pred_fallthru
        _
      %p276 = scmp.le.s32.totalorder 1, %s20
      %p277 = scmp.lt.s32.totalorder %s20, 3
      %p278 = pnand %p276, %p277
      %p279 = pneg %p278
      // Predicated region
      $region45: #{tpu_custom_call.1} parent=5 // pred_check
        _
      $region46: #{tpu_custom_call.1} parent=5 // pred_check_branch
        %281 = sbr.rel (%p278) target = $region48
      $region47: #{tpu_custom_call.1} parent=5 // pred_region
        %s282 = ssub.s32 %s20, 1
        %s283 = sand.u32 %s33, 1
        %s284 = scalar_lea.sflag [#allocation3], %s283
        %s285 = sand.u32 %s33, 1
        %s286 = smul.addr %s285, 32
        %s287 = scalar_lea.vmem [#allocation2], %s286
        // Predicated region
        $region49: #{tpu_custom_call.1} parent=47 // pred_check
          %p288 = pneg %p46
        $region50: #{tpu_custom_call.1} parent=47 // pred_check_branch
          %290 = sbr.rel (%p288) target = $region52
        $region51: #{tpu_custom_call.1} parent=47 // pred_region
          %291 = dma.done %s284, 512
        $region52: #{tpu_custom_call.1} parent=47 // pred_fallthru
          _
        // Predicated region
        $region53: #{tpu_custom_call.1} parent=47 // pred_check
          %p292 = pneg %p67
        $region54: #{tpu_custom_call.1} parent=47 // pred_check_branch
          %294 = sbr.rel (%p292) target = $region56
        $region55: #{tpu_custom_call.1} parent=47 // pred_region
          %295 = dma.done [#allocation6], 1152
        $region56: #{tpu_custom_call.1} parent=47 // pred_fallthru
          _
        // Predicated region
        $region57: #{tpu_custom_call.1} parent=47 // pred_check
          %p296 = pneg %p109
        $region58: #{tpu_custom_call.1} parent=47 // pred_check_branch
          %298 = sbr.rel (%p296) target = $region60
        $region59: #{tpu_custom_call.1} parent=47 // pred_region
          %299 = dma.done [#allocation6], 1536
        $region60: #{tpu_custom_call.1} parent=47 // pred_fallthru
          _
        %s300 = sand.u32 %s33, 1
        %s301 = scalar_lea.sflag [#allocation3], %s300
        %s302 = sand.u32 %s33, 1
        %s303 = smul.addr %s302, 32
        %s304 = scalar_lea.vmem [#allocation2], %s303
        %p305 = pneg %p46
        %p306 = pneg %p43
        %p307 = pneg %p67
        %p308 = pneg %p64
        %p309 = pneg %p88
        %p310 = pneg %p85
        %p311 = pneg %p109
        %p312 = pneg %p106
        %p313 = pneg %p130
        %p314 = pneg %p127
        %p315 = pneg %p151
        %p316 = pneg %p148
        %p317 = pneg %p172
        %p318 = pneg %p169
        %p319 = pneg %p198
        %p320 = pneg %p195
        %s321 = sand.u32 %s185, 1
        %s322 = scalar_lea.sflag [#allocation4], %s321
        %s323 = sand.u32 %s185, 1
        %s324 = smul.addr %s323, 32
        %s325 = scalar_lea.vmem [#allocation8], %s324
        %s326 = smul.u32 4, %s25
        %s327 = smul.u32 4, %s25
        %v328 = vld [vmem:[%s287] sm:$0xff]
        %v329 = vld [vmem:[%s287 + $0x8] sm:$0xff]
        %v330 = vld [vmem:[%s287 + $0x10] sm:$0xff]
        %v331 = vld [vmem:[%s287 + $0x18] sm:$0xff]
        %v332 = vld [vmem:[#allocation5] sm:$0xff]
        %v333 = vld [vmem:[#allocation5 + $0x8] sm:$0xff]
        %v334 = vld [vmem:[#allocation5 + $0x10] sm:$0xff]
        %v335 = vld [vmem:[#allocation5 + $0x18] sm:$0xff]
        %v336 = vld [vmem:[#allocation5 + $0x20] sm:$0xff]
        %v337 = vld [vmem:[#allocation5 + $0x28] sm:$0xff]
        %v338 = vld [vmem:[#allocation5 + $0x30] sm:$0xff]
        %v339 = vld [vmem:[#allocation5 + $0x38] sm:$0xff]
        %v340 = vld [vmem:[#allocation5 + $0x40] sm:$0xff]
        %v341 = vld [vmem:[%s2] sm:$0x1]
        %v343 = vlaneseq
        %v344 = vshrl.u32 %v343, 7
        %v345 = vsub.s32 0, %v344
        %v346 = vrot.slane %v341, %v345
        %vm348 = vcmask 588800
        %v350 = vsel %vm348, %v328, 0
        %v353 = vsel %vm348, %v329, 0
        %v356 = vsel %vm348, %v330, 0
        %v359 = vsel %vm348, %v331, 0
        %361 = vmatprep.subr.mxu0 0.0
        %362 = vmatpush1.msra.mxu0 0.0
        %363 = vmatprep.subr.mxu0 0.0
        %364 = vmatpush1.msra.mxu0 0.0
        %365 = vmatprep.subr.mxu0 0.0
        %366 = vmatpush1.msra.mxu0 0.0
        %367 = vmatprep.subr.mxu0 0.0
        %368 = vmatpush1.msra.mxu0 0.0
        %369 = vmatprep.subr.mxu0 0.0
        %370 = vmatpush1.msra.mxu0 0.0
        %371 = vmatprep.subr.mxu0 0.0
        %372 = vmatpush1.msra.mxu0 0.0
        %373 = vmatprep.subr.mxu0 0.0
        %374 = vmatpush1.msra.mxu0 0.0
        %375 = vmatprep.subr.mxu0 0.0
        %376 = vmatpush1.msra.mxu0 %v340
        %377 = vmatprep.subr.mxu0 0.0
        %378 = vmatpush1.msra.mxu0 %v339
        %379 = vmatprep.subr.mxu0 0.0
        %380 = vmatpush1.msra.mxu0 %v338
        %381 = vmatprep.subr.mxu0 0.0
        %382 = vmatpush1.msra.mxu0 %v337
        %383 = vmatprep.subr.mxu0 0.0
        %384 = vmatpush1.msra.mxu0 %v336
        %385 = vmatprep.subr.mxu0 0.0
        %386 = vmatpush1.msra.mxu0 %v335
        %387 = vmatprep.subr.mxu0 0.0
        %388 = vmatpush1.msra.mxu0 %v334
        %389 = vmatprep.subr.mxu0 0.0
        %390 = vmatpush1.msra.mxu0 %v333
        %391 = vmatprep.subr.mxu0 0.0
        %392 = vmatpush1.msra.mxu0 %v332
        %393 = vmatprep.subr.mxu0 0.0
        %394 = vmatpush2.msra.mxu0 0.0
        %395 = vmatprep.subr.mxu0 0.0
        %396 = vmatpush2.msra.mxu0 0.0
        %397 = vmatprep.subr.mxu0 0.0
        %398 = vmatpush2.msra.mxu0 0.0
        %399 = vmatprep.subr.mxu0 0.0
        %400 = vmatpush2.msra.mxu0 0.0
        %401 = vmatprep.subr.mxu0 0.0
        %402 = vmatpush2.msra.mxu0 0.0
        %403 = vmatprep.subr.mxu0 0.0
        %404 = vmatpush2.msra.mxu0 0.0
        %405 = vmatprep.subr.mxu0 0.0
        %406 = vmatpush2.msra.mxu0 0.0
        %407 = vmatprep.subr.mxu0 0.0
        %408 = vmatpush2.msra.mxu0 0.0
        %409 = vmatprep.subr.mxu0 0.0
        %410 = vmatpush2.msra.mxu0 0.0
        %411 = vmatprep.subr.mxu0 0.0
        %412 = vmatpush2.msra.mxu0 0.0
        %413 = vmatprep.subr.mxu0 0.0
        %414 = vmatpush2.msra.mxu0 0.0
        %415 = vmatprep.subr.mxu0 0.0
        %416 = vmatpush2.msra.mxu0 0.0
        %417 = vmatprep.subr.mxu0 0.0
        %418 = vmatpush2.msra.mxu0 0.0
        %419 = vmatprep.subr.mxu0 0.0
        %420 = vmatpush2.msra.mxu0 0.0
        %421 = vmatprep.subr.mxu0 0.0
        %422 = vmatpush2.msra.mxu0 0.0
        %423 = vmatprep.subr.mxu0 0.0
        %424 = vmatpush2.msra.mxu0 0.0
        %425 = vmatprep.mubr.f32.mxu0 0.0
        %426 = vmatmul.mubr.f32.gmra.mxu0 %v350
        %v427 = vpop.f32.mrf.mxu0
        %v428 = vadd.f32 %v346, %v427
        %v429 = vpop.f32.mrf.mxu0
        %430 = vmatprep.mubr.f32.mxu0 0.0
        %431 = vmatmul.mubr.f32.gmra.mxu0 %v353
        %v432 = vpop.f32.mrf.mxu0
        %v433 = vadd.f32 %v346, %v432
        %v434 = vpop.f32.mrf.mxu0
        %435 = vmatprep.mubr.f32.mxu0 0.0
        %436 = vmatmul.mubr.f32.gmra.mxu0 %v356
        %v437 = vpop.f32.mrf.mxu0
        %v438 = vadd.f32 %v346, %v437
        %v439 = vpop.f32.mrf.mxu0
        %440 = vmatprep.mubr.f32.mxu0 0.0
        %441 = vmatmul.mubr.f32.gmra.mxu0 %v359
        %v442 = vpop.f32.mrf.mxu0
        %v443 = vadd.f32 %v346, %v442
        %v444 = vpop.f32.mrf.mxu0
        %445 = vdwg.mxu0
        %v446 = vld [vmem:[#allocation7] sm:$0xff]
        %v447 = vld [vmem:[#allocation7 + $0x8] sm:$0xff]
        %v448 = vld [vmem:[#allocation7 + $0x10] sm:$0xff]
        %v449 = vld [vmem:[#allocation7 + $0x18] sm:$0xff]
        %v450 = vld [vmem:[#allocation7 + $0x20] sm:$0xff]
        %v451 = vld [vmem:[#allocation7 + $0x28] sm:$0xff]
        %v452 = vld [vmem:[#allocation7 + $0x30] sm:$0xff]
        %v453 = vld [vmem:[#allocation7 + $0x38] sm:$0xff]
        %v454 = vld [vmem:[#allocation7 + $0x40] sm:$0xff]
        %v455 = vld [vmem:[#allocation7 + $0x48] sm:$0xff]
        %v456 = vld [vmem:[#allocation7 + $0x50] sm:$0xff]
        %v457 = vld [vmem:[#allocation7 + $0x58] sm:$0xff]
        %v458 = vld [vmem:[%s4] sm:$0x1]
        %v460 = vlaneseq
        %v461 = vshrl.u32 %v460, 7
        %v462 = vsub.s32 0, %v461
        %v463 = vrot.slane %v458, %v462
        %vm465 = vcmask 785408
        %v467 = vsel %vm465, %v428, 0
        %v470 = vsel %vm465, %v433, 0
        %v473 = vsel %vm465, %v438, 0
        %v476 = vsel %vm465, %v443, 0
        %478 = vmatprep.subr.mxu0 0.0
        %479 = vmatpush1.msra.mxu0 0.0
        %480 = vmatprep.subr.mxu0 0.0
        %481 = vmatpush1.msra.mxu0 0.0
        %482 = vmatprep.subr.mxu0 0.0
        %483 = vmatpush1.msra.mxu0 0.0
        %484 = vmatprep.subr.mxu0 0.0
        %485 = vmatpush1.msra.mxu0 0.0
        %486 = vmatprep.subr.mxu0 0.0
        %487 = vmatpush1.msra.mxu0 %v457
        %488 = vmatprep.subr.mxu0 0.0
        %489 = vmatpush1.msra.mxu0 %v456
        %490 = vmatprep.subr.mxu0 0.0
        %491 = vmatpush1.msra.mxu0 %v455
        %492 = vmatprep.subr.mxu0 0.0
        %493 = vmatpush1.msra.mxu0 %v454
        %494 = vmatprep.subr.mxu0 0.0
        %495 = vmatpush1.msra.mxu0 %v453
        %496 = vmatprep.subr.mxu0 0.0
        %497 = vmatpush1.msra.mxu0 %v452
        %498 = vmatprep.subr.mxu0 0.0
        %499 = vmatpush1.msra.mxu0 %v451
        %500 = vmatprep.subr.mxu0 0.0
        %501 = vmatpush1.msra.mxu0 %v450
        %502 = vmatprep.subr.mxu0 0.0
        %503 = vmatpush1.msra.mxu0 %v449
        %504 = vmatprep.subr.mxu0 0.0
        %505 = vmatpush1.msra.mxu0 %v448
        %506 = vmatprep.subr.mxu0 0.0
        %507 = vmatpush1.msra.mxu0 %v447
        %508 = vmatprep.subr.mxu0 0.0
        %509 = vmatpush1.msra.mxu0 %v446
        %510 = vmatprep.subr.mxu0 0.0
        %511 = vmatpush2.msra.mxu0 0.0
        %512 = vmatprep.subr.mxu0 0.0
        %513 = vmatpush2.msra.mxu0 0.0
        %514 = vmatprep.subr.mxu0 0.0
        %515 = vmatpush2.msra.mxu0 0.0
        %516 = vmatprep.subr.mxu0 0.0
        %517 = vmatpush2.msra.mxu0 0.0
        %518 = vmatprep.subr.mxu0 0.0
        %519 = vmatpush2.msra.mxu0 0.0
        %520 = vmatprep.subr.mxu0 0.0
        %521 = vmatpush2.msra.mxu0 0.0
        %522 = vmatprep.subr.mxu0 0.0
        %523 = vmatpush2.msra.mxu0 0.0
        %524 = vmatprep.subr.mxu0 0.0
        %525 = vmatpush2.msra.mxu0 0.0
        %526 = vmatprep.subr.mxu0 0.0
        %527 = vmatpush2.msra.mxu0 0.0
        %528 = vmatprep.subr.mxu0 0.0
        %529 = vmatpush2.msra.mxu0 0.0
        %530 = vmatprep.subr.mxu0 0.0
        %531 = vmatpush2.msra.mxu0 0.0
        %532 = vmatprep.subr.mxu0 0.0
        %533 = vmatpush2.msra.mxu0 0.0
        %534 = vmatprep.subr.mxu0 0.0
        %535 = vmatpush2.msra.mxu0 0.0
        %536 = vmatprep.subr.mxu0 0.0
        %537 = vmatpush2.msra.mxu0 0.0
        %538 = vmatprep.subr.mxu0 0.0
        %539 = vmatpush2.msra.mxu0 0.0
        %540 = vmatprep.subr.mxu0 0.0
        %541 = vmatpush2.msra.mxu0 0.0
        %542 = vmatprep.mubr.f32.mxu0 0.0
        %543 = vmatmul.mubr.f32.gmra.mxu0 %v467
        %v544 = vpop.f32.mrf.mxu0
        %v545 = vadd.f32 %v463, %v544
        %v546 = vpop.f32.mrf.mxu0
        %547 = vmatprep.mubr.f32.mxu0 0.0
        %548 = vmatmul.mubr.f32.gmra.mxu0 %v470
        %v549 = vpop.f32.mrf.mxu0
        %v550 = vadd.f32 %v463, %v549
        %v551 = vpop.f32.mrf.mxu0
        %552 = vmatprep.mubr.f32.mxu0 0.0
        %553 = vmatmul.mubr.f32.gmra.mxu0 %v473
        %v554 = vpop.f32.mrf.mxu0
        %v555 = vadd.f32 %v463, %v554
        %v556 = vpop.f32.mrf.mxu0
        %557 = vmatprep.mubr.f32.mxu0 0.0
        %558 = vmatmul.mubr.f32.gmra.mxu0 %v476
        %v559 = vpop.f32.mrf.mxu0
        %v560 = vadd.f32 %v463, %v559
        %v561 = vpop.f32.mrf.mxu0
        %562 = vdwg.mxu0
        %v563 = vmax.f32 %v545, 0.0
        %v564 = vmax.f32 %v550, 0.0
        %v565 = vmax.f32 %v555, 0.0
        %v566 = vmax.f32 %v560, 0.0
        %v567 = vld [vmem:[%s5] sm:$0x1]
        %v569 = vlaneseq
        %v570 = vshrl.u32 %v569, 7
        %v571 = vsub.s32 0, %v570
        %v572 = vrot.slane %v567, %v571
        %v574 = vmul.f32 %v563, %v572
        %v575 = vmul.f32 %v564, %v572
        %v576 = vmul.f32 %v565, %v572
        %v577 = vmul.f32 %v566, %v572
        %vm578 = vcmask 523264
        %v579 = vsel %vm578, %v574, 0.0
        %580 = vadd.xlane.f32.xlu0 %v579
        %v581 = vpop.xlane.xlu0 %580
        %v582 = vsel %vm578, %v575, 0.0
        %583 = vadd.xlane.f32.xlu0 %v582
        %v584 = vpop.xlane.xlu0 %583
        %v585 = vsel %vm578, %v576, 0.0
        %586 = vadd.xlane.f32.xlu0 %v585
        %v587 = vpop.xlane.xlu0 %586
        %v588 = vsel %vm578, %v577, 0.0
        %589 = vadd.xlane.f32.xlu0 %v588
        %v590 = vpop.xlane.xlu0 %589
        %595 = vrot.lane.b32.xlu0 %v574, 64
        %v596 = vpop.permute.xlu0 %595
        %597 = vrot.lane.b32.xlu0 %v575, 64
        %v598 = vpop.permute.xlu0 %597
        %599 = vrot.lane.b32.xlu0 %v576, 64
        %v600 = vpop.permute.xlu0 %599
        %601 = vrot.lane.b32.xlu0 %v577, 64
        %v602 = vpop.permute.xlu0 %601
        %v607 = vsel %vm578, %v596, 0.0
        %608 = vadd.xlane.f32.xlu0 %v607
        %v609 = vpop.xlane.xlu0 %608
        %v610 = vsel %vm578, %v598, 0.0
        %611 = vadd.xlane.f32.xlu0 %v610
        %v612 = vpop.xlane.xlu0 %611
        %v613 = vsel %vm578, %v600, 0.0
        %614 = vadd.xlane.f32.xlu0 %v613
        %v615 = vpop.xlane.xlu0 %614
        %v616 = vsel %vm578, %v602, 0.0
        %617 = vadd.xlane.f32.xlu0 %v616
        %v618 = vpop.xlane.xlu0 %617
        %v619 = vld [vmem:[%s6] sm:$0x1]
        %v621 = vlaneseq
        %v622 = vshrl.u32 %v621, 7
        %v623 = vsub.s32 0, %v622
        %v624 = vrot.slane %v619, %v623
        %v626 = vadd.f32 %v581, %v624
        %v627 = vadd.f32 %v584, %v624
        %v628 = vadd.f32 %v587, %v624
        %v629 = vadd.f32 %v590, %v624
        %v630 = vxor.u32 %v626, 2147483648
        %v631 = vxor.u32 %v627, 2147483648
        %v632 = vxor.u32 %v628, 2147483648
        %v633 = vxor.u32 %v629, 2147483648
        %v634 = vmul.f32 %v630, 1.442695
        %v635 = vpow.pop %v634
        %v636 = vmul.f32 %v631, 1.442695
        %v637 = vpow.pop %v636
        %v638 = vmul.f32 %v632, 1.442695
        %v639 = vpow.pop %v638
        %v640 = vmul.f32 %v633, 1.442695
        %v641 = vpow.pop %v640
        %v642 = vadd.f32 %v635, 1.0
        %v643 = vadd.f32 %v637, 1.0
        %v644 = vadd.f32 %v639, 1.0
        %v645 = vadd.f32 %v641, 1.0
        %v646 = vrcp.pop %v642
        %v647 = vmul.f32 1.0, %v646
        %v648 = vrcp.pop %v643
        %v649 = vmul.f32 1.0, %v648
        %v650 = vrcp.pop %v644
        %v651 = vmul.f32 1.0, %v650
        %v652 = vrcp.pop %v645
        %v653 = vmul.f32 1.0, %v652
        %v654 = vadd.f32 %v609, %v624
        %v655 = vadd.f32 %v612, %v624
        %v656 = vadd.f32 %v615, %v624
        %v657 = vadd.f32 %v618, %v624
        %v658 = vxor.u32 %v654, 2147483648
        %v659 = vxor.u32 %v655, 2147483648
        %v660 = vxor.u32 %v656, 2147483648
        %v661 = vxor.u32 %v657, 2147483648
        %v662 = vmul.f32 %v658, 1.442695
        %v663 = vpow.pop %v662
        %v664 = vmul.f32 %v659, 1.442695
        %v665 = vpow.pop %v664
        %v666 = vmul.f32 %v660, 1.442695
        %v667 = vpow.pop %v666
        %v668 = vmul.f32 %v661, 1.442695
        %v669 = vpow.pop %v668
        %v670 = vadd.f32 %v663, 1.0
        %v671 = vadd.f32 %v665, 1.0
        %v672 = vadd.f32 %v667, 1.0
        %v673 = vadd.f32 %v669, 1.0
        %v674 = vrcp.pop %v670
        %v675 = vmul.f32 1.0, %v674
        %v676 = vrcp.pop %v671
        %v677 = vmul.f32 1.0, %v676
        %v678 = vrcp.pop %v672
        %v679 = vmul.f32 1.0, %v678
        %v680 = vrcp.pop %v673
        %v681 = vmul.f32 1.0, %v680
        %683 = vset.pattern.permute.xlu0 0
        %684 = vperm.xlu0 %683, %v647
        %v685 = vpop.permute.xlu0 %684
        %688 = vset.pattern.permute.xlu0 0
        %689 = vperm.xlu0 %688, %v649
        %v690 = vpop.permute.xlu0 %689
        %693 = vset.pattern.permute.xlu0 0
        %694 = vperm.xlu0 %693, %v651
        %v695 = vpop.permute.xlu0 %694
        %698 = vset.pattern.permute.xlu0 0
        %699 = vperm.xlu0 %698, %v653
        %v700 = vpop.permute.xlu0 %699
        %v702 = vmul.f32 %v685, %v428
        %v703 = vmul.f32 %v690, %v433
        %v704 = vmul.f32 %v695, %v438
        %v705 = vmul.f32 %v700, %v443
        %v706 = vsub.f32 1.0, %v647
        %v707 = vsub.f32 1.0, %v649
        %v708 = vsub.f32 1.0, %v651
        %v709 = vsub.f32 1.0, %v653
        %711 = vset.pattern.permute.xlu0 0
        %712 = vperm.xlu0 %711, %v706
        %v713 = vpop.permute.xlu0 %712
        %716 = vset.pattern.permute.xlu0 0
        %717 = vperm.xlu0 %716, %v707
        %v718 = vpop.permute.xlu0 %717
        %721 = vset.pattern.permute.xlu0 0
        %722 = vperm.xlu0 %721, %v708
        %v723 = vpop.permute.xlu0 %722
        %726 = vset.pattern.permute.xlu0 0
        %727 = vperm.xlu0 %726, %v709
        %v728 = vpop.permute.xlu0 %727
        %v730 = vmul.f32 %v713, %v428
        %v731 = vmul.f32 %v718, %v433
        %v732 = vmul.f32 %v723, %v438
        %v733 = vmul.f32 %v728, %v443
        %738 = vrot.lane.b32.xlu0 %v730, 96
        %v739 = vpop.permute.xlu0 %738
        %740 = vrot.lane.b32.xlu0 %v731, 96
        %v741 = vpop.permute.xlu0 %740
        %742 = vrot.lane.b32.xlu0 %v732, 96
        %v743 = vpop.permute.xlu0 %742
        %744 = vrot.lane.b32.xlu0 %v733, 96
        %v745 = vpop.permute.xlu0 %744
        %v750 = vadd.f32 %v702, %v739
        %v751 = vadd.f32 %v703, %v741
        %v752 = vadd.f32 %v704, %v743
        %v753 = vadd.f32 %v705, %v745
        %755 = vset.pattern.permute.xlu0 1
        %756 = vperm.xlu0 %755, %v675
        %v757 = vpop.permute.xlu0 %756
        %760 = vset.pattern.permute.xlu0 1
        %761 = vperm.xlu0 %760, %v677
        %v762 = vpop.permute.xlu0 %761
        %765 = vset.pattern.permute.xlu0 1
        %766 = vperm.xlu0 %765, %v679
        %v767 = vpop.permute.xlu0 %766
        %770 = vset.pattern.permute.xlu0 1
        %771 = vperm.xlu0 %770, %v681
        %v772 = vpop.permute.xlu0 %771
        %v774 = vmul.f32 %v757, %v428
        %v775 = vmul.f32 %v762, %v433
        %v776 = vmul.f32 %v767, %v438
        %v777 = vmul.f32 %v772, %v443
        %v778 = vsub.f32 1.0, %v675
        %v779 = vsub.f32 1.0, %v677
        %v780 = vsub.f32 1.0, %v679
        %v781 = vsub.f32 1.0, %v681
        %783 = vset.pattern.permute.xlu0 1
        %784 = vperm.xlu0 %783, %v778
        %v785 = vpop.permute.xlu0 %784
        %788 = vset.pattern.permute.xlu0 1
        %789 = vperm.xlu0 %788, %v779
        %v790 = vpop.permute.xlu0 %789
        %793 = vset.pattern.permute.xlu0 1
        %794 = vperm.xlu0 %793, %v780
        %v795 = vpop.permute.xlu0 %794
        %798 = vset.pattern.permute.xlu0 1
        %799 = vperm.xlu0 %798, %v781
        %v800 = vpop.permute.xlu0 %799
        %v802 = vmul.f32 %v785, %v428
        %v803 = vmul.f32 %v790, %v433
        %v804 = vmul.f32 %v795, %v438
        %v805 = vmul.f32 %v800, %v443
        %810 = vrot.lane.b32.xlu0 %v802, 64
        %v811 = vpop.permute.xlu0 %810
        %812 = vrot.lane.b32.xlu0 %v803, 64
        %v813 = vpop.permute.xlu0 %812
        %814 = vrot.lane.b32.xlu0 %v804, 64
        %v815 = vpop.permute.xlu0 %814
        %816 = vrot.lane.b32.xlu0 %v805, 64
        %v817 = vpop.permute.xlu0 %816
        %v822 = vadd.f32 %v774, %v811
        %v823 = vadd.f32 %v775, %v813
        %v824 = vadd.f32 %v776, %v815
        %v825 = vadd.f32 %v777, %v817
        %830 = vrot.lane.b32.xlu0 %v822, 32
        %v831 = vpop.permute.xlu0 %830
        %832 = vrot.lane.b32.xlu0 %v823, 32
        %v833 = vpop.permute.xlu0 %832
        %834 = vrot.lane.b32.xlu0 %v824, 32
        %v835 = vpop.permute.xlu0 %834
        %836 = vrot.lane.b32.xlu0 %v825, 32
        %v837 = vpop.permute.xlu0 %836
        %vm842 = vcmask 261120
        %v843 = vsel %vm842, %v750, %v831
        %v844 = vsel %vm842, %v751, %v833
        %v845 = vsel %vm842, %v752, %v835
        %v846 = vsel %vm842, %v753, %v837
        %847 = vst.msk [vmem:[%s325] sm:$0xff] %vm578, %v843
        %848 = vst.msk [vmem:[%s325 + $0x8] sm:$0xff] %vm578, %v844
        %849 = vst.msk [vmem:[%s325 + $0x10] sm:$0xff] %vm578, %v845
        %850 = vst.msk [vmem:[%s325 + $0x18] sm:$0xff] %vm578, %v846
        %s851 = sand.u32 %s185, 1
        %s852 = scalar_lea.sflag [#allocation4], %s851
        %s853 = sand.u32 %s185, 1
        %s854 = smul.addr %s853, 32
        %s855 = scalar_lea.vmem [#allocation8], %s854
        // Predicated region
        $region61: #{tpu_custom_call.1} parent=47 // pred_check
          %p856 = pneg %p195
        $region62: #{tpu_custom_call.1} parent=47 // pred_check_branch
          %858 = sbr.rel (%p856) target = $region64
        $region63: #{tpu_custom_call.1} parent=47 // pred_region
          %s859 = smul.u32 4, %s25
          %s861 = ssub.s32 512, 512
          %862 = vsyncadd %s852, %s861
          %s863 = smul.addr %s859, 128
          %s864 = scalar_lea.hbm %s7, %s863
          %s865 = sshll.u32 %s855, 4
          %s866 = int_to_ptr.vmem [resolvable:$true] %s865
          %871 = dma.vmem_to_hbm [thread:$0]  %s866, 512, %s864, %s852, 128, 128, 8
        $region64: #{tpu_custom_call.1} parent=47 // pred_fallthru
          _
      $region48: #{tpu_custom_call.1} parent=5 // pred_fallthru
        _
      %p872 = scmp.le.s32.totalorder 2, %s20
      // Predicated region
      $region65: #{tpu_custom_call.1} parent=5 // pred_check
        %p873 = pneg %p872
      $region66: #{tpu_custom_call.1} parent=5 // pred_check_branch
        %875 = sbr.rel (%p873) target = $region68
      $region67: #{tpu_custom_call.1} parent=5 // pred_region
        %s876 = ssub.s32 %s20, 2
        // Predicated region
        $region69: #{tpu_custom_call.1} parent=67 // pred_check
          %p877 = pneg %p201
        $region70: #{tpu_custom_call.1} parent=67 // pred_check_branch
          %879 = sbr.rel (%p877) target = $region72
        $region71: #{tpu_custom_call.1} parent=67 // pred_region
          %s880 = sand.u32 %s186, 1
          %s881 = scalar_lea.sflag [#allocation4], %s880
          %s882 = sand.u32 %s186, 1
          %s883 = smul.addr %s882, 32
          %s884 = scalar_lea.vmem [#allocation8], %s883
          %885 = dma.done %s881, 512
        $region72: #{tpu_custom_call.1} parent=67 // pred_fallthru
          _
      $region68: #{tpu_custom_call.1} parent=5 // pred_fallthru
        _
    $region6: #{tpu_custom_call.1} parent=1 // loop_footer
      %s24 = sadd.s32 1, %s20
    $region7: #{tpu_custom_call.1} parent=1 // loop_footer_branch
      %19 = sbr.rel target = $region3
    $region8: #{tpu_custom_call.1} parent=1 // loop_exit
      _
    %886 = vsyncpa [#allocation3], 1
    %s887 = scalar_lea.sflag [#allocation3], 1
    %888 = vsyncpa %s887, 1
    %889 = vsyncpa [#allocation6], 1
    %890 = vsyncpa [#allocation4], 1
    %s891 = scalar_lea.sflag [#allocation4], 1
    %892 = vsyncpa %s891, 1

</llo_original>
